<compile_context>
chip_gen: v7x
topology: tpu7x:2x2x1
jax: 0.10.0
libtpu: 0.0.40
codegen_flags: <defaults>
</compile_context>

<pallas_src>
import jax
import jax.numpy as jnp
from jax.experimental import pallas as pl
from jax.experimental.pallas import tpu as pltpu

N_FEATURES = 4   # n_features in the PyTorch module
N_HIDDEN = 6     # n_hidden  in the PyTorch module

# edge_index from the spec:  [[0,1],[1,4],[4,3],[3,2]].t()  ->  (2, E)
EDGE_INDEX = jnp.array([[0, 1], [1, 4], [4, 3], [3, 2]], dtype=jnp.int32).T


# ----------------------------- Pallas kernel ------------------------------ #
def gcn_kernel(a_ref, x_ref, wb_ref, out_ref):
    """a_ref  : (N, N) dense adjacency WITH self loops, a[target, source]
       x_ref  : (N, F) node features
       wb_ref : (F+1, H) packed [W^T ; b]      (single DMA for both operands)
       out_ref: (N, H) output node embeddings"""
    F = x_ref.shape[1]

    a = a_ref[...]                              # (N, N)
    x = x_ref[...]                              # (N, F)
    w_t = wb_ref[0:F, :]                        # (F, H)
    b = wb_ref[F:F + 1, :]                      # (1, H)

    # Symmetric GCN normalization kept as two row-scalings (no transpose):
    #   out = D^-1/2 * ( A @ ( D^-1/2 * (X W^T) ) ) + b
    deg = jnp.sum(a, axis=1, keepdims=True)                      # (N, 1)
    d_inv_sqrt = jnp.where(deg > 0.0, jax.lax.rsqrt(deg), 0.0)   # (N, 1)

    xw = jnp.dot(x, w_t, preferred_element_type=jnp.float32)     # (N, H) transform
    msg = d_inv_sqrt * xw                                        # scale source rows
    agg = jnp.dot(a, msg, preferred_element_type=jnp.float32)    # (N, H) propagate
    out_ref[...] = d_inv_sqrt * agg + b                          # scale targets + bias


# ------------------------------- wrapper ----------------------------------- #
def sentence_gnn_forward(x, edge_index, params):
    """x: (N, F) float32, edge_index: (2, E) int32.
    Returns (N, H) node embeddings, matching PyG GCNConv defaults
    (add_self_loops=True, normalize=True, bias=True)."""
    N, F = x.shape
    H = params["weight"].shape[0]

    src = edge_index[0]
    dst = edge_index[1]
    # dense adjacency with self loops, a[target, source]
    # TODO(synk): data-dependent scatter stays in the wrapper (no tiny-Pallas
    # scatter on TPU); the kernel consumes the dense matrix.
    a = jnp.zeros((N, N), jnp.float32).at[dst, src].add(1.0)
    a = a + jnp.eye(N, dtype=jnp.float32)

    # pack [W^T ; b] into one lane-dense slab -> a single DMA
    wb = jnp.concatenate(
        [params["weight"].T.astype(jnp.float32),
         params["bias"].reshape(1, H).astype(jnp.float32)], axis=0)   # (F+1, H)

    vmem = pl.BlockSpec(memory_space=pltpu.MemorySpace.VMEM)
    out = pl.pallas_call(
        gcn_kernel,
        out_shape=jax.ShapeDtypeStruct((N, H), jnp.float32),
        in_specs=[vmem, vmem, vmem],
        out_specs=vmem,
    )(a, x.astype(jnp.float32), wb)
    return out


# --------------------------- deterministic init ----------------------------- #
def init_params(key, n_hidden, n_features):
    k_w, k_b = jax.random.split(key)
    bound = (1.0 / n_features) ** 0.5
    return dict(
        weight=jax.random.uniform(k_w, (n_hidden, n_features), jnp.float32,
                                  -bound, bound),
        bias=jax.random.uniform(k_b, (n_hidden,), jnp.float32, -bound, bound),
    )


# ------------------------------ pure-JAX ref -------------------------------- #
def reference_forward(x, edge_index, params):
    """Edge-based reference replicating PyG GCNConv.forward semantics."""
    N = x.shape[0]
    src, dst = edge_index[0], edge_index[1]
    loop = jnp.arange(N, dtype=edge_index.dtype)
    src = jnp.concatenate([src, loop])
    dst = jnp.concatenate([dst, loop])
    ew = jnp.ones(src.shape[0], jnp.float32)

    deg = jnp.zeros(N, jnp.float32).at[dst].add(ew)
    d_inv_sqrt = jnp.where(deg > 0, deg ** -0.5, 0.0)
    norm = d_inv_sqrt[src] * ew * d_inv_sqrt[dst]

    xw = x @ params["weight"].T                     # (N, H)
    msg = xw[src] * norm[:, None]
    out = jnp.zeros((N, xw.shape[1]), jnp.float32).at[dst].add(msg)
    return out + params["bias"]


if __name__ == "__main__":
    key = jax.random.PRNGKey(0)
    k_x, k_p = jax.random.split(key)

    n_nodes = int(EDGE_INDEX.max()) + 1            # 5 nodes in the spec graph
    x = jax.random.normal(k_x, (n_nodes, N_FEATURES), jnp.float32)
    params = init_params(k_p, N_HIDDEN, N_FEATURES)

    out = sentence_gnn_forward(x, EDGE_INDEX, params)
    jax.block_until_ready(out)

    ref = reference_forward(x, EDGE_INDEX, params)
    assert out.shape == (n_nodes, N_HIDDEN)
    assert jnp.allclose(out, ref, atol=1e-5, rtol=1e-5)

    print("KERNEL_OK")
</pallas_src>

<mosaic_0001>
module attributes {stable_mosaic.version = 11 : i64} {
  func.func @gcn_kernel(%arg0: memref<5x5xf32, #tpu.memory_space<vmem>>, %arg1: memref<5x4xf32, #tpu.memory_space<vmem>>, %arg2: memref<5x6xf32, #tpu.memory_space<vmem>>, %arg3: memref<5x6xf32, #tpu.memory_space<vmem>>) attributes {dimension_semantics = [], scalar_prefetch = 0 : i64, scratch_operands = 0 : i64, tpu.core_type = #tpu.core_type<tc>} {
    %c0 = arith.constant 0 : index
    %c0_0 = arith.constant 0 : index
    %0 = vector.load %arg0[%c0, %c0_0] : memref<5x5xf32, #tpu.memory_space<vmem>>, vector<5x5xf32>
    %c0_1 = arith.constant 0 : index
    %c0_2 = arith.constant 0 : index
    %1 = vector.load %arg1[%c0_1, %c0_2] : memref<5x4xf32, #tpu.memory_space<vmem>>, vector<5x4xf32>
    %c0_3 = arith.constant 0 : index
    %c0_4 = arith.constant 0 : index
    %2 = vector.load %arg2[%c0_3, %c0_4] : memref<5x6xf32, #tpu.memory_space<vmem>>, vector<4x6xf32>
    %c4 = arith.constant 4 : index
    %c0_5 = arith.constant 0 : index
    %3 = vector.load %arg2[%c4, %c0_5] : memref<5x6xf32, #tpu.memory_space<vmem>>, vector<1x6xf32>
    %cst = arith.constant dense<0.000000e+00> : vector<5xf32>
    %4 = vector.multi_reduction <add>, %0, %cst [1] : vector<5x5xf32> to vector<5xf32>
    %5 = vector.shape_cast %4 : vector<5xf32> to vector<5x1xf32>
    %cst_6 = arith.constant 0.000000e+00 : f32
    %6 = vector.broadcast %cst_6 : f32 to vector<5x1xf32>
    %7 = arith.cmpf ogt, %5, %6 : vector<5x1xf32>
    %8 = math.rsqrt %5 : vector<5x1xf32>
    %cst_7 = arith.constant 0.000000e+00 : f32
    %9 = vector.broadcast %cst_7 : f32 to vector<5x1xf32>
    %10 = arith.select %7, %8, %9 : vector<5x1xi1>, vector<5x1xf32>
    %cst_8 = arith.constant dense<0.000000e+00> : vector<5x6xf32>
    %11 = tpu.matmul %1, %2, %cst_8 {dimension_numbers = #tpu.dot_dimension_numbers<[1], [0], [0], [1], [0, 0, 1, 1], [], []>} : vector<5x4xf32>, vector<4x6xf32>, vector<5x6xf32> -> vector<5x6xf32>
    %12 = vector.broadcast %10 : vector<5x1xf32> to vector<5x6xf32>
    %13 = arith.mulf %12, %11 : vector<5x6xf32>
    %cst_9 = arith.constant dense<0.000000e+00> : vector<5x6xf32>
    %14 = tpu.matmul %0, %13, %cst_9 {dimension_numbers = #tpu.dot_dimension_numbers<[1], [0], [0], [1], [0, 0, 1, 1], [], []>} : vector<5x5xf32>, vector<5x6xf32>, vector<5x6xf32> -> vector<5x6xf32>
    %15 = vector.broadcast %10 : vector<5x1xf32> to vector<5x6xf32>
    %16 = arith.mulf %15, %14 : vector<5x6xf32>
    %17 = vector.broadcast %3 : vector<1x6xf32> to vector<5x6xf32>
    %18 = arith.addf %16, %17 : vector<5x6xf32>
    %c0_10 = arith.constant 0 : index
    %c0_11 = arith.constant 0 : index
    %19 = vector.load %arg3[%c0_10, %c0_11] : memref<5x6xf32, #tpu.memory_space<vmem>>, vector<5x6xf32>
    tpu.vector_store %arg3[%c0_10, %c0_11], %18 {strides = array<i32>} : memref<5x6xf32, #tpu.memory_space<vmem>>, vector<5x6xf32>,
    return
  }
}

</mosaic_0001>

<llo_original>
// kernel: tpu_custom_call.1
$region0: #{tpu_custom_call.1}
  #allocation0 [shape = 'u32[]', space=smem, size = 0x4, offset = 0x4, fixed_abs, tag = 'smem constant byte address 0x4 - core index']
  #allocation1 [shape = 'u32[144,128]{1,0:T(1,128)}', space=vmem, size = 0x12000, scoped, tag = 'internal scratch']
  %s0 = inlined_call_operand.vmem [shape: f32[5,5], index: 0, kind: input, shape index: {}]
  %s1 = inlined_call_operand.vmem [shape: f32[5,4], index: 1, kind: input, shape index: {}]
  %s2 = inlined_call_operand.vmem [shape: f32[5,6], index: 2, kind: input, shape index: {}]
  %s3 = inlined_call_operand.hbm [shape: f32[5,6], index: 3, kind: output, shape index: {}]
  %s4 = sld [smem:[#allocation0]]
  $region22: #{tpu_custom_call.1} parent=0
    _
  %s6 = ssub.s32 1, %s4
  %s7 = scalar_select 0, %s6, %s4
  $region1: #{tpu_custom_call.1} parent=0
    #allocation2 [shape = 'u8[4096]{0}', space=vmem, size = 0x1000, scoped, tag = 'output window, operand 0, single buffered']
    #allocation3 [shape = 's32[1]{0}', space=sflag, size = 0x4, scoped, tag = 'scoped memory for tpu_custom_call.1']
    %8 = vsyncpa [#allocation3], 0
    // Predicated region
    $region2: #{tpu_custom_call.1} parent=1 // pred_check
      _
    $region3: #{tpu_custom_call.1} parent=1 // pred_check_branch
      %10 = sbr.rel (0) target = $region5
    $region4: #{tpu_custom_call.1} parent=1 // pred_region
      _
    $region5: #{tpu_custom_call.1} parent=1 // pred_fallthru
      _
    // Predicated region
    $region6: #{tpu_custom_call.1} parent=1 // pred_check
      _
    $region7: #{tpu_custom_call.1} parent=1 // pred_check_branch
      %12 = sbr.rel (0) target = $region9
    $region8: #{tpu_custom_call.1} parent=1 // pred_region
      _
    $region9: #{tpu_custom_call.1} parent=1 // pred_fallthru
      _
    // Predicated region
    $region10: #{tpu_custom_call.1} parent=1 // pred_check
      _
    $region11: #{tpu_custom_call.1} parent=1 // pred_check_branch
      %14 = sbr.rel (0) target = $region13
    $region12: #{tpu_custom_call.1} parent=1 // pred_region
      _
    $region13: #{tpu_custom_call.1} parent=1 // pred_fallthru
      _
    %v15 = vld [vmem:[%s0] sm:$0x1f]
    %v16 = vld [vmem:[%s1] sm:$0x1f]
    %v17 = vld [vmem:[%s2] sm:$0xf]
    %v18 = vld [vmem:[%s2 + $0x4] sm:$0x1]
    %vm19 = vcmask 36864
    %v20 = vsel %vm19, %v15, 0.0
    %21 = vadd.xlane.f32.xlu0 %v20
    %v22 = vpop.xlane.xlu0 %21
    %vm23 = vcmp.gt.f32.partialorder %v22, 0.0
    %v24 = vrsqrt.pop %v22
    %v25 = vsel %vm23, %v24, 0.0
    %vm26 = vcmask 31744
    %v28 = vsel %vm26, %v16, 0
    %vm30 = vcmask 1043456
    %v32 = vsel %vm30, %v17, 0
    %34 = vmatprep.subr.mxu0 0.0
    %35 = vmatpush1.msra.mxu0 %v32
    %36 = vmatprep.subr.mxu0 0.0
    %37 = vmatpush1.msra.mxu0 0.0
    %38 = vmatprep.subr.mxu0 0.0
    %39 = vmatpush1.msra.mxu0 0.0
    %40 = vmatprep.subr.mxu0 0.0
    %41 = vmatpush1.msra.mxu0 0.0
    %42 = vmatprep.subr.mxu0 0.0
    %43 = vmatpush1.msra.mxu0 0.0
    %44 = vmatprep.subr.mxu0 0.0
    %45 = vmatpush1.msra.mxu0 0.0
    %46 = vmatprep.subr.mxu0 0.0
    %47 = vmatpush1.msra.mxu0 0.0
    %48 = vmatprep.subr.mxu0 0.0
    %49 = vmatpush1.msra.mxu0 0.0
    %50 = vmatprep.subr.mxu0 0.0
    %51 = vmatpush1.msra.mxu0 0.0
    %52 = vmatprep.subr.mxu0 0.0
    %53 = vmatpush1.msra.mxu0 0.0
    %54 = vmatprep.subr.mxu0 0.0
    %55 = vmatpush1.msra.mxu0 0.0
    %56 = vmatprep.subr.mxu0 0.0
    %57 = vmatpush1.msra.mxu0 0.0
    %58 = vmatprep.subr.mxu0 0.0
    %59 = vmatpush1.msra.mxu0 0.0
    %60 = vmatprep.subr.mxu0 0.0
    %61 = vmatpush1.msra.mxu0 0.0
    %62 = vmatprep.subr.mxu0 0.0
    %63 = vmatpush1.msra.mxu0 0.0
    %64 = vmatprep.subr.mxu0 0.0
    %65 = vmatpush1.msra.mxu0 0.0
    %66 = vmatprep.subr.mxu0 0.0
    %67 = vmatpush1.msra.mxu0 0.0
    %68 = vmatprep.subr.mxu0 0.0
    %69 = vmatpush1.msra.mxu0 0.0
    %70 = vmatprep.subr.mxu0 0.0
    %71 = vmatpush1.msra.mxu0 0.0
    %72 = vmatprep.subr.mxu0 0.0
    %73 = vmatpush1.msra.mxu0 0.0
    %74 = vmatprep.subr.mxu0 0.0
    %75 = vmatpush1.msra.mxu0 0.0
    %76 = vmatprep.subr.mxu0 0.0
    %77 = vmatpush1.msra.mxu0 0.0
    %78 = vmatprep.subr.mxu0 0.0
    %79 = vmatpush1.msra.mxu0 0.0
    %80 = vmatprep.subr.mxu0 0.0
    %81 = vmatpush1.msra.mxu0 0.0
    %82 = vmatprep.subr.mxu0 0.0
    %83 = vmatpush1.msra.mxu0 0.0
    %84 = vmatprep.subr.mxu0 0.0
    %85 = vmatpush1.msra.mxu0 0.0
    %86 = vmatprep.subr.mxu0 0.0
    %87 = vmatpush1.msra.mxu0 0.0
    %88 = vmatprep.subr.mxu0 0.0
    %89 = vmatpush1.msra.mxu0 0.0
    %90 = vmatprep.subr.mxu0 0.0
    %91 = vmatpush1.msra.mxu0 0.0
    %92 = vmatprep.subr.mxu0 0.0
    %93 = vmatpush1.msra.mxu0 0.0
    %94 = vmatprep.subr.mxu0 0.0
    %95 = vmatpush1.msra.mxu0 0.0
    %96 = vmatprep.subr.mxu0 0.0
    %97 = vmatpush1.msra.mxu0 0.0
    %98 = vmatprep.mubr.f32.mxu0 0.0
    %99 = vmatmul.mubr.f32.gmra.mrb[0].mxu0 %v28
    %v100 = vpop.f32.mrb[0].mxu0
    %v101 = vadd.f32 0.0, %v100
    %v102 = vpop.f32.mrb[0].mxu0
    %103 = vdwg.mxu0
    %v104 = vmul.f32 %v25, %v101
    %vm105 = vcmask 39936
    %v107 = vsel %vm105, %v15, 0
    %vm109 = vcmask 1044480
    %v111 = vsel %vm109, %v104, 0
    %113 = vmatprep.subr.mxu0 0.0
    %114 = vmatpush1.msra.mxu0 %v111
    %115 = vmatprep.subr.mxu0 0.0
    %116 = vmatpush1.msra.mxu0 0.0
    %117 = vmatprep.subr.mxu0 0.0
    %118 = vmatpush1.msra.mxu0 0.0
    %119 = vmatprep.subr.mxu0 0.0
    %120 = vmatpush1.msra.mxu0 0.0
    %121 = vmatprep.subr.mxu0 0.0
    %122 = vmatpush1.msra.mxu0 0.0
    %123 = vmatprep.subr.mxu0 0.0
    %124 = vmatpush1.msra.mxu0 0.0
    %125 = vmatprep.subr.mxu0 0.0
    %126 = vmatpush1.msra.mxu0 0.0
    %127 = vmatprep.subr.mxu0 0.0
    %128 = vmatpush1.msra.mxu0 0.0
    %129 = vmatprep.subr.mxu0 0.0
    %130 = vmatpush1.msra.mxu0 0.0
    %131 = vmatprep.subr.mxu0 0.0
    %132 = vmatpush1.msra.mxu0 0.0
    %133 = vmatprep.subr.mxu0 0.0
    %134 = vmatpush1.msra.mxu0 0.0
    %135 = vmatprep.subr.mxu0 0.0
    %136 = vmatpush1.msra.mxu0 0.0
    %137 = vmatprep.subr.mxu0 0.0
    %138 = vmatpush1.msra.mxu0 0.0
    %139 = vmatprep.subr.mxu0 0.0
    %140 = vmatpush1.msra.mxu0 0.0
    %141 = vmatprep.subr.mxu0 0.0
    %142 = vmatpush1.msra.mxu0 0.0
    %143 = vmatprep.subr.mxu0 0.0
    %144 = vmatpush1.msra.mxu0 0.0
    %145 = vmatprep.subr.mxu0 0.0
    %146 = vmatpush1.msra.mxu0 0.0
    %147 = vmatprep.subr.mxu0 0.0
    %148 = vmatpush1.msra.mxu0 0.0
    %149 = vmatprep.subr.mxu0 0.0
    %150 = vmatpush1.msra.mxu0 0.0
    %151 = vmatprep.subr.mxu0 0.0
    %152 = vmatpush1.msra.mxu0 0.0
    %153 = vmatprep.subr.mxu0 0.0
    %154 = vmatpush1.msra.mxu0 0.0
    %155 = vmatprep.subr.mxu0 0.0
    %156 = vmatpush1.msra.mxu0 0.0
    %157 = vmatprep.subr.mxu0 0.0
    %158 = vmatpush1.msra.mxu0 0.0
    %159 = vmatprep.subr.mxu0 0.0
    %160 = vmatpush1.msra.mxu0 0.0
    %161 = vmatprep.subr.mxu0 0.0
    %162 = vmatpush1.msra.mxu0 0.0
    %163 = vmatprep.subr.mxu0 0.0
    %164 = vmatpush1.msra.mxu0 0.0
    %165 = vmatprep.subr.mxu0 0.0
    %166 = vmatpush1.msra.mxu0 0.0
    %167 = vmatprep.subr.mxu0 0.0
    %168 = vmatpush1.msra.mxu0 0.0
    %169 = vmatprep.subr.mxu0 0.0
    %170 = vmatpush1.msra.mxu0 0.0
    %171 = vmatprep.subr.mxu0 0.0
    %172 = vmatpush1.msra.mxu0 0.0
    %173 = vmatprep.subr.mxu0 0.0
    %174 = vmatpush1.msra.mxu0 0.0
    %175 = vmatprep.subr.mxu0 0.0
    %176 = vmatpush1.msra.mxu0 0.0
    %177 = vmatprep.mubr.f32.mxu0 0.0
    %178 = vmatmul.mubr.f32.gmra.mrb[0].mxu0 %v107
    %v179 = vpop.f32.mrb[0].mxu0
    %v180 = vadd.f32 0.0, %v179
    %v181 = vpop.f32.mrb[0].mxu0
    %182 = vdwg.mxu0
    %v183 = vmul.f32 %v25, %v180
    %v184 = vlaneseq
    %v185 = vshrl.u32 %v184, 7
    %v186 = vsub.s32 0, %v185
    %v187 = vrot.slane %v18, %v186
    %v188 = vadd.f32 %v183, %v187
    %vm189 = vcmask 45056
    %190 = vst.msk [vmem:[#allocation2] sm:$0x1f] %vm189, %v188
    // Predicated region
    $region14: #{tpu_custom_call.1} parent=1 // pred_check
      _
    $region15: #{tpu_custom_call.1} parent=1 // pred_check_branch
      %192 = sbr.rel (0) target = $region17
    $region16: #{tpu_custom_call.1} parent=1 // pred_region
      %s194 = ssub.s32 128, 128
      %195 = vsyncadd [#allocation3], %s194
      %s197 = sshll.u32 [#allocation2], 4
      %s198 = int_to_ptr.vmem [resolvable:$true] %s197
      %200 = dma.vmem_to_hbm [thread:$0]  %s198, 128, %s3, [#allocation3]
    $region17: #{tpu_custom_call.1} parent=1 // pred_fallthru
      _
    // Predicated region
    $region18: #{tpu_custom_call.1} parent=1 // pred_check
      _
    $region19: #{tpu_custom_call.1} parent=1 // pred_check_branch
      %202 = sbr.rel (0) target = $region21
    $region20: #{tpu_custom_call.1} parent=1 // pred_region
      %203 = dma.done [#allocation3], 128
    $region21: #{tpu_custom_call.1} parent=1 // pred_fallthru
      _
    %204 = vsyncpa [#allocation3], 1

</llo_original>
